<compile_context>
chip_gen: v7x
topology: tpu7x:2x2x1
jax: 0.10.0
libtpu: 0.0.40
codegen_flags: <defaults>
</compile_context>

<pallas_src>
import math

import jax
import jax.numpy as jnp
from jax.experimental import pallas as pl
from jax.experimental.pallas import tpu as pltpu

# KAN_layer hyper-parameters (module defaults)
GRID_SIZE = 2
SPLINE_ORDER = 2
GRID_RANGE = (-3.0, 3.0)
K_BASES = GRID_SIZE + SPLINE_ORDER              # 4 spline bases per feature
N_GRID_PTS = GRID_SIZE + 2 * SPLINE_ORDER + 1   # 7 grid points per feature
LANE = 128                                      # TPU lane width (pad channel dims to this)

# Uniform grid -> bake knots as compile-time constants.
_H = (GRID_RANGE[1] - GRID_RANGE[0]) / GRID_SIZE                     # 3.0
_KNOTS = tuple(GRID_RANGE[0] + (j - SPLINE_ORDER) * _H for j in range(N_GRID_PTS))
# -> (-9, -6, -3, 0, 3, 6, 9)

# Product of the constant de Boor denominators; folded into the spline weights at init.
_SPLINE_SCALE_FOLD = 1.0
for _k in range(1, SPLINE_ORDER + 1):
    _SPLINE_SCALE_FOLD /= (_k * _H)              # = 1/(2*H^2) = 1/18 for the defaults


def _round_up(a, b):
    return ((a + b - 1) // b) * b


# ----------------------------- in-kernel math helpers -----------------------------

def _gelu(x):
    # tanh-approximate GELU (the tanh goes to the EUP slot).
    c = 0.7978845608028654  # sqrt(2/pi)
    return 0.5 * x * (1.0 + jnp.tanh(c * (x + 0.044715 * x * x * x)))


def _bspline_bases(x):
    """Unscaled B-spline bases (uniform grid baked in as constants).

    x: (rows, din_pad) float32. Returns K_BASES arrays, each (rows, din_pad).
    The constant 1/(k*H) de Boor factors are folded into the packed spline weights
    (see init_kan_params), so the recursion here is multiply/subtract only.
    """
    g = _KNOTS
    # Shared step functions: c_j = 1[x >= g_j]; order-0 basis_j = c_j - c_{j+1}.
    steps = [(x >= g[j]).astype(jnp.float32) for j in range(N_GRID_PTS)]
    bases = [steps[j] - steps[j + 1] for j in range(N_GRID_PTS - 1)]
    # Hoisted differences d_j = x - g_j, reused at every de Boor level.
    d = [x - g[j] for j in range(N_GRID_PTS)]
    for k in range(1, SPLINE_ORDER + 1):
        bases = [d[j] * bases[j] - d[j + k + 1] * bases[j + 1]
                 for j in range(len(bases) - 1)]
    return bases                                 # K_BASES arrays


def _kan_matmul(x, w_packed):
    """Fused KAN layer: one MXU call against the packed [base | spline_0..3] weight.

    x:        (rows, din_pad)  float32, padded channels must be zero.
    w_packed: (5*din_pad, dout_pad) bf16, rows/cols beyond the logical dims are zero.
    Returns   (rows, dout_pad) float32.
    """
    pieces = [_gelu(x)] + _bspline_bases(x)
    act = jnp.concatenate([p.astype(w_packed.dtype) for p in pieces], axis=-1)
    return jnp.dot(act, w_packed, preferred_element_type=jnp.float32)


# ----------------------------- KAN layer kernel -----------------------------

def _kan_kernel(x_ref, w_ref, o_ref):
    o_ref[...] = _kan_matmul(x_ref[...].astype(jnp.float32), w_ref[...]).astype(o_ref.dtype)


def kan_forward(x2d, p, out_dtype=jnp.float32):
    """KAN layer on 2-D input.  x2d: (N, din) -> (N, dout) (logical, unpadded)."""
    N, din = x2d.shape
    assert din == p["din"]
    din_p, dout_p, dout = p["din_pad"], p["dout_pad"], p["dout"]

    # Row tiling: big enough to amortize per-step overhead; pad rows/lanes with 0.
    tn = min(512, _round_up(max(N, 8), 8))
    n_pad = _round_up(N, tn)
    if (n_pad, din_p) != (N, din):
        x2d = jnp.pad(x2d, ((0, n_pad - N), (0, din_p - din)))

    out = pl.pallas_call(
        _kan_kernel,
        out_shape=jax.ShapeDtypeStruct((n_pad, dout_p), out_dtype),
        grid=(n_pad // tn,),
        in_specs=[
            pl.BlockSpec((tn, din_p), lambda i: (i, 0)),
            pl.BlockSpec(p["packed"].shape, lambda i: (0, 0)),   # weight resident
        ],
        out_specs=pl.BlockSpec((tn, dout_p), lambda i: (i, 0)),
        compiler_params=pltpu.CompilerParams(dimension_semantics=("parallel",)),
    )(x2d, p["packed"])

    if (n_pad, dout_p) != (N, dout):
        out = out[:N, :dout]
    return out


# ------- fused, token-tiled reweighting (mean -> KAN -> GELU -> KAN -> softmax) -------

def reweighting_forward(c_embed, w_embed, p1, p2, c_pad):
    B, W, C = c_embed.shape
    tw = min(512, _round_up(W, 8))
    w_pad = _round_up(W, tw)
    if w_pad != W:
        pad = ((0, 0), (0, w_pad - W), (0, 0))
        c_embed = jnp.pad(c_embed, pad)
        w_embed = jnp.pad(w_embed, pad)

    din1_pad = p1["din_pad"]
    inv_w = 1.0 / W          # mean over the *real* token count (pad rows are zero)

    def kernel(c_ref, w_ref, w1_ref, w2_ref, o_ref, acc_ref):
        t = pl.program_id(0)

        @pl.when(t == 0)
        def _init():
            acc_ref[...] = jnp.zeros_like(acc_ref)

        # token-sum of (c_embed + w_embed) for this W-tile
        acc_ref[...] += jnp.sum(
            c_ref[...].astype(jnp.float32) + w_ref[...].astype(jnp.float32), axis=1)

        @pl.when(t == pl.num_programs(0) - 1)
        def _final():
            pooled = acc_ref[...] * inv_w                              # (B, C)
            if din1_pad > C:
                pooled = jnp.concatenate(
                    [pooled, jnp.zeros((B, din1_pad - C), jnp.float32)], axis=-1)
            # reweighting MLP: KAN(C, C//4) -> GELU -> KAN(C//4, 3C); dropout == identity
            h = _gelu(_kan_matmul(pooled, w1_ref[...]))                # (B, mid_pad)
            rw = _kan_matmul(h, w2_ref[...])                           # (B, 3*c_pad)
            # Branch t occupies the lane-aligned block [t*c_pad, t*c_pad + C) (columns
            # pre-scattered at init, equivalent to torch reshape(B,C,3).permute(2,0,1)).
            a0 = rw[:, 0 * c_pad:1 * c_pad]
            a1 = rw[:, 1 * c_pad:2 * c_pad]
            a2 = rw[:, 2 * c_pad:3 * c_pad]
            m = jnp.maximum(jnp.maximum(a0, a1), a2)
            e0 = jnp.exp(a0 - m)
            e1 = jnp.exp(a1 - m)
            e2 = jnp.exp(a2 - m)
            inv = pl.reciprocal(e0 + e1 + e2, approx=True)
            o_ref[0] = e0 * inv                                        # branch-0 weight
            o_ref[1] = e1 * inv                                        # branch-1 weight

    out = pl.pallas_call(
        kernel,
        out_shape=jax.ShapeDtypeStruct((2, B, c_pad), jnp.float32),
        grid=(w_pad // tw,),
        in_specs=[
            pl.BlockSpec((B, tw, C), lambda t: (0, t, 0)),
            pl.BlockSpec((B, tw, C), lambda t: (0, t, 0)),
            pl.BlockSpec(p1["packed"].shape, lambda t: (0, 0)),
            pl.BlockSpec(p2["packed"].shape, lambda t: (0, 0)),
        ],
        out_specs=pl.BlockSpec((2, B, c_pad), lambda t: (0, 0, 0)),
        scratch_shapes=[pltpu.VMEM((B, C), jnp.float32)],
        compiler_params=pltpu.CompilerParams(dimension_semantics=("arbitrary",)),
    )(c_embed, w_embed, p1["packed"], p2["packed"])

    rw = out[:, :, :C]                       # drop lane padding (tiny tensor)
    return jnp.transpose(rw, (1, 0, 2))      # (B, 2, C)


# ------------------- combine (softmax-weighted) + projection kernel -------------------

def _combine_proj_kernel(c_ref, w_ref, rw_ref, pwt_ref, pb_ref, o_ref):
    rw = rw_ref[0]                                       # (2, C): branch weights, this batch
    c = c_ref[0].astype(jnp.float32)                     # (tw, C)
    w = w_ref[0].astype(jnp.float32)                     # (tw, C)
    y = c * rw[0:1, :] + w * rw[1:2, :]                  # c_embed*wt[0] + w_embed*wt[1]
    out = jnp.dot(y.astype(pwt_ref.dtype), pwt_ref[...],
                  preferred_element_type=jnp.float32) + pb_ref[...]
    o_ref[0] = out.astype(o_ref.dtype)


def combine_and_project(c_embed, w_embed, rw_bc, proj_wt, proj_b):
    B, W, C = c_embed.shape
    tw = min(512, _round_up(W, 8))
    w_pad = _round_up(W, tw)
    if w_pad != W:
        pad = ((0, 0), (0, w_pad - W), (0, 0))
        c_embed = jnp.pad(c_embed, pad)
        w_embed = jnp.pad(w_embed, pad)

    out = pl.pallas_call(
        _combine_proj_kernel,
        out_shape=jax.ShapeDtypeStruct((B, w_pad, C), jnp.float32),
        grid=(B, w_pad // tw),
        in_specs=[
            pl.BlockSpec((1, tw, C), lambda b, w: (b, w, 0)),
            pl.BlockSpec((1, tw, C), lambda b, w: (b, w, 0)),
            pl.BlockSpec((1, 2, C), lambda b, w: (b, 0, 0)),
            pl.BlockSpec((C, C), lambda b, w: (0, 0)),        # bf16 proj weight resident
            pl.BlockSpec((1, C), lambda b, w: (0, 0)),
        ],
        out_specs=pl.BlockSpec((1, tw, C), lambda b, w: (b, w, 0)),
        compiler_params=pltpu.CompilerParams(
            dimension_semantics=("parallel", "parallel")),
    )(c_embed, w_embed, rw_bc, proj_wt, proj_b)

    return out[:, :W, :] if w_pad != W else out


# ----------------------------- parameter init + forward -----------------------------

def init_kan_params(key, din, dout, scale=0.1, dest_cols=None, out_width=None):
    """Deterministic KAN params packed into one (5*din_pad, dout_pad) bf16 matrix.

    Row blocks: [base_weight.T | spline_W0 | spline_W1 | spline_W2 | spline_W3].
    The constant de Boor scale (1/(1*H * 2*H)) is folded into the spline blocks.
    `dest_cols` scatters logical output column j to padded column dest_cols[j]
    (used to group the reweighting branches into lane-aligned blocks);
    rows/cols beyond the logical (din, dout) stay exactly zero so lane-padding is exact.
    """
    k1, k2 = jax.random.split(key)
    base_wt = scale * jax.random.normal(k1, (din, dout), jnp.float32)            # == base_weight.T
    spline_wt = scale * jax.random.normal(k2, (K_BASES, din, dout), jnp.float32)
    spline_wt = spline_wt * _SPLINE_SCALE_FOLD         # fold de Boor denominators

    din_p = _round_up(din, LANE)
    dout_p = _round_up(out_width if out_width is not None else dout, LANE)

    packed = jnp.zeros(((K_BASES + 1) * din_p, dout_p), jnp.float32)
    if dest_cols is None:
        packed = packed.at[:din, :dout].set(base_wt)
        for k in range(K_BASES):
            r0 = (k + 1) * din_p
            packed = packed.at[r0:r0 + din, :dout].set(spline_wt[k])
    else:
        packed = packed.at[:din, dest_cols].set(base_wt)
        for k in range(K_BASES):
            r0 = (k + 1) * din_p
            packed = packed.at[r0:r0 + din, dest_cols].set(spline_wt[k])

    return dict(packed=packed.astype(jnp.bfloat16),     # bf16 operands, f32 accumulation
                din=din, dout=dout, din_pad=din_p, dout_pad=dout_p)


def weighted_permute_mlp_forward(x, params, seg_dim):
    B, W, C = x.shape
    S = C // seg_dim
    assert W * S == C, "WeightedPermuteMLP math requires W == seg_dim"
    c_pad = _round_up(C, LANE)

    # c_embed = mlp_c(x)  (bf16 output: written once, re-read twice by mem-bound kernels)
    c_embed = kan_forward(x.reshape(B * W, C), params["mlp_c"],
                          out_dtype=jnp.bfloat16).reshape(B, W, C)

    # w_embed = mlp_w(permuted segments)
    # TODO(synk): fold this permute into BlockSpec index maps (currently XLA transposes).
    w_in = x.reshape(B, W, seg_dim, S).transpose(0, 2, 1, 3).reshape(B * seg_dim, W * S)
    w_embed = kan_forward(w_in, params["mlp_w"], out_dtype=jnp.bfloat16)
    w_embed = w_embed.reshape(B, seg_dim, W, S).transpose(0, 2, 1, 3).reshape(B, W, C)

    # fused, token-tiled: mean -> KAN(C,C//4) -> GELU -> KAN(C//4,3C) -> 3-way softmax
    rw_bc = reweighting_forward(c_embed, w_embed,
                                params["rw_fc1"], params["rw_fc2"], c_pad)

    # weighted combine of the two branches + proj Linear(C, C); proj_drop == identity
    return combine_and_project(c_embed, w_embed, rw_bc,
                               params["proj_wt"], params["proj_b"])


if __name__ == "__main__":
    B, W, C = 2, 8, 32
    seg_dim = 8   # the module's reshapes only type-check when W == seg_dim
    key = jax.random.PRNGKey(0)
    kx, k1, k2, k3, k4, k5 = jax.random.split(key, 6)

    x = jax.random.normal(kx, (B, W, C), jnp.float32)

    # Scatter reweighting output columns so branch t sits in the lane-aligned block
    # [t*C_pad, t*C_pad + C) — equivalent to torch's reshape(B, C, 3).permute(2, 0, 1).
    c_pad = _round_up(C, LANE)
    j = jnp.arange(3 * C)
    branch_dest = (j % 3) * c_pad + (j // 3)

    params = {
        "mlp_c": init_kan_params(k1, C, C),
        "mlp_w": init_kan_params(k2, C, C),
        "rw_fc1": init_kan_params(k3, C, C // 4),
        "rw_fc2": init_kan_params(k4, C // 4, 3 * C,
                                  dest_cols=branch_dest, out_width=3 * c_pad),
        # Linear(C, C): weight pre-transposed, stored bf16 (f32 accumulation in-kernel)
        "proj_wt": (0.1 * jax.random.normal(k5, (C, C), jnp.float32)).astype(jnp.bfloat16),
        "proj_b": jnp.zeros((1, C), jnp.float32),
    }

    out = weighted_permute_mlp_forward(x, params, seg_dim)
    out = jax.block_until_ready(out)
    assert out.shape == (B, W, C), out.shape
    assert bool(jnp.all(jnp.isfinite(out)))
    print("KERNEL_OK")
</pallas_src>

<mosaic_0001>
module attributes {stable_mosaic.version = 11 : i64} {
  func.func @_kan_kernel(%arg0: i32, %arg1: memref<16x128xf32, #tpu.memory_space<vmem>>, %arg2: memref<640x128xbf16, #tpu.memory_space<vmem>>, %arg3: memref<16x128xbf16, #tpu.memory_space<vmem>>) attributes {dimension_semantics = [#tpu.dimension_semantics<parallel>], iteration_bounds = array<i64: 1>, scalar_prefetch = 0 : i64, scratch_operands = 0 : i64, tpu.core_type = #tpu.core_type<tc>, window_params = [{transform_indices = @transform_0, window_bounds = array<i64: 16, 128>}, {pipeline_mode = #tpu.pipeline_mode<synchronous>, transform_indices = @transform_1, window_bounds = array<i64: 640, 128>}, {transform_indices = @transform_2, window_bounds = array<i64: 16, 128>}]} {
    %c0 = arith.constant 0 : index
    %c0_0 = arith.constant 0 : index
    %0 = vector.load %arg1[%c0, %c0_0] : memref<16x128xf32, #tpu.memory_space<vmem>>, vector<16x128xf32>
    %c0_1 = arith.constant 0 : index
    %c0_2 = arith.constant 0 : index
    %1 = vector.load %arg2[%c0_1, %c0_2] : memref<640x128xbf16, #tpu.memory_space<vmem>>, vector<640x128xbf16>
    %cst = arith.constant 5.000000e-01 : f32
    %2 = vector.broadcast %cst : f32 to vector<16x128xf32>
    %3 = arith.mulf %2, %0 : vector<16x128xf32>
    %cst_3 = arith.constant 4.471500e-02 : f32
    %4 = vector.broadcast %cst_3 : f32 to vector<16x128xf32>
    %5 = arith.mulf %4, %0 : vector<16x128xf32>
    %6 = arith.mulf %5, %0 : vector<16x128xf32>
    %7 = arith.mulf %6, %0 : vector<16x128xf32>
    %8 = arith.addf %0, %7 : vector<16x128xf32>
    %cst_4 = arith.constant 0.797884583 : f32
    %9 = vector.broadcast %cst_4 : f32 to vector<16x128xf32>
    %10 = arith.mulf %9, %8 : vector<16x128xf32>
    %11 = math.tanh %10 : vector<16x128xf32>
    %cst_5 = arith.constant 1.000000e+00 : f32
    %12 = vector.broadcast %cst_5 : f32 to vector<16x128xf32>
    %13 = arith.addf %12, %11 : vector<16x128xf32>
    %14 = arith.mulf %3, %13 : vector<16x128xf32>
    %cst_6 = arith.constant -9.000000e+00 : f32
    %15 = vector.broadcast %cst_6 : f32 to vector<16x128xf32>
    %16 = arith.cmpf oge, %0, %15 : vector<16x128xf32>
    %17 = arith.extui %16 : vector<16x128xi1> to vector<16x128xi32>
    %18 = arith.sitofp %17 : vector<16x128xi32> to vector<16x128xf32>
    %cst_7 = arith.constant -6.000000e+00 : f32
    %19 = vector.broadcast %cst_7 : f32 to vector<16x128xf32>
    %20 = arith.cmpf oge, %0, %19 : vector<16x128xf32>
    %21 = arith.extui %20 : vector<16x128xi1> to vector<16x128xi32>
    %22 = arith.sitofp %21 : vector<16x128xi32> to vector<16x128xf32>
    %cst_8 = arith.constant -3.000000e+00 : f32
    %23 = vector.broadcast %cst_8 : f32 to vector<16x128xf32>
    %24 = arith.cmpf oge, %0, %23 : vector<16x128xf32>
    %25 = arith.extui %24 : vector<16x128xi1> to vector<16x128xi32>
    %26 = arith.sitofp %25 : vector<16x128xi32> to vector<16x128xf32>
    %cst_9 = arith.constant 0.000000e+00 : f32
    %27 = vector.broadcast %cst_9 : f32 to vector<16x128xf32>
    %28 = arith.cmpf oge, %0, %27 : vector<16x128xf32>
    %29 = arith.extui %28 : vector<16x128xi1> to vector<16x128xi32>
    %30 = arith.sitofp %29 : vector<16x128xi32> to vector<16x128xf32>
    %cst_10 = arith.constant 3.000000e+00 : f32
    %31 = vector.broadcast %cst_10 : f32 to vector<16x128xf32>
    %32 = arith.cmpf oge, %0, %31 : vector<16x128xf32>
    %33 = arith.extui %32 : vector<16x128xi1> to vector<16x128xi32>
    %34 = arith.sitofp %33 : vector<16x128xi32> to vector<16x128xf32>
    %cst_11 = arith.constant 6.000000e+00 : f32
    %35 = vector.broadcast %cst_11 : f32 to vector<16x128xf32>
    %36 = arith.cmpf oge, %0, %35 : vector<16x128xf32>
    %37 = arith.extui %36 : vector<16x128xi1> to vector<16x128xi32>
    %38 = arith.sitofp %37 : vector<16x128xi32> to vector<16x128xf32>
    %cst_12 = arith.constant 9.000000e+00 : f32
    %39 = vector.broadcast %cst_12 : f32 to vector<16x128xf32>
    %40 = arith.cmpf oge, %0, %39 : vector<16x128xf32>
    %41 = arith.extui %40 : vector<16x128xi1> to vector<16x128xi32>
    %42 = arith.sitofp %41 : vector<16x128xi32> to vector<16x128xf32>
    %43 = arith.subf %18, %22 : vector<16x128xf32>
    %44 = arith.subf %22, %26 : vector<16x128xf32>
    %45 = arith.subf %26, %30 : vector<16x128xf32>
    %46 = arith.subf %30, %34 : vector<16x128xf32>
    %47 = arith.subf %34, %38 : vector<16x128xf32>
    %48 = arith.subf %38, %42 : vector<16x128xf32>
    %cst_13 = arith.constant -9.000000e+00 : f32
    %49 = vector.broadcast %cst_13 : f32 to vector<16x128xf32>
    %50 = arith.subf %0, %49 : vector<16x128xf32>
    %cst_14 = arith.constant -6.000000e+00 : f32
    %51 = vector.broadcast %cst_14 : f32 to vector<16x128xf32>
    %52 = arith.subf %0, %51 : vector<16x128xf32>
    %cst_15 = arith.constant -3.000000e+00 : f32
    %53 = vector.broadcast %cst_15 : f32 to vector<16x128xf32>
    %54 = arith.subf %0, %53 : vector<16x128xf32>
    %cst_16 = arith.constant 0.000000e+00 : f32
    %55 = vector.broadcast %cst_16 : f32 to vector<16x128xf32>
    %56 = arith.subf %0, %55 : vector<16x128xf32>
    %cst_17 = arith.constant 3.000000e+00 : f32
    %57 = vector.broadcast %cst_17 : f32 to vector<16x128xf32>
    %58 = arith.subf %0, %57 : vector<16x128xf32>
    %cst_18 = arith.constant 6.000000e+00 : f32
    %59 = vector.broadcast %cst_18 : f32 to vector<16x128xf32>
    %60 = arith.subf %0, %59 : vector<16x128xf32>
    %cst_19 = arith.constant 9.000000e+00 : f32
    %61 = vector.broadcast %cst_19 : f32 to vector<16x128xf32>
    %62 = arith.subf %0, %61 : vector<16x128xf32>
    %63 = arith.mulf %50, %43 : vector<16x128xf32>
    %64 = arith.mulf %54, %44 : vector<16x128xf32>
    %65 = arith.subf %63, %64 : vector<16x128xf32>
    %66 = arith.mulf %52, %44 : vector<16x128xf32>
    %67 = arith.mulf %56, %45 : vector<16x128xf32>
    %68 = arith.subf %66, %67 : vector<16x128xf32>
    %69 = arith.mulf %54, %45 : vector<16x128xf32>
    %70 = arith.mulf %58, %46 : vector<16x128xf32>
    %71 = arith.subf %69, %70 : vector<16x128xf32>
    %72 = arith.mulf %56, %46 : vector<16x128xf32>
    %73 = arith.mulf %60, %47 : vector<16x128xf32>
    %74 = arith.subf %72, %73 : vector<16x128xf32>
    %75 = arith.mulf %58, %47 : vector<16x128xf32>
    %76 = arith.mulf %62, %48 : vector<16x128xf32>
    %77 = arith.subf %75, %76 : vector<16x128xf32>
    %78 = arith.mulf %50, %65 : vector<16x128xf32>
    %79 = arith.mulf %56, %68 : vector<16x128xf32>
    %80 = arith.subf %78, %79 : vector<16x128xf32>
    %81 = arith.mulf %52, %68 : vector<16x128xf32>
    %82 = arith.mulf %58, %71 : vector<16x128xf32>
    %83 = arith.subf %81, %82 : vector<16x128xf32>
    %84 = arith.mulf %54, %71 : vector<16x128xf32>
    %85 = arith.mulf %60, %74 : vector<16x128xf32>
    %86 = arith.subf %84, %85 : vector<16x128xf32>
    %87 = arith.mulf %56, %74 : vector<16x128xf32>
    %88 = arith.mulf %62, %77 : vector<16x128xf32>
    %89 = arith.subf %87, %88 : vector<16x128xf32>
    %90 = arith.truncf %14 : vector<16x128xf32> to vector<16x128xbf16>
    %91 = arith.truncf %80 : vector<16x128xf32> to vector<16x128xbf16>
    %92 = arith.truncf %83 : vector<16x128xf32> to vector<16x128xbf16>
    %93 = arith.truncf %86 : vector<16x128xf32> to vector<16x128xbf16>
    %94 = arith.truncf %89 : vector<16x128xf32> to vector<16x128xbf16>
    %95 = tpu.concatenate %90, %91, %92, %93, %94 in 1 : vector<16x128xbf16>, vector<16x128xbf16>, vector<16x128xbf16>, vector<16x128xbf16>, vector<16x128xbf16> -> vector<16x640xbf16>
    %cst_20 = arith.constant dense<0.000000e+00> : vector<16x128xf32>
    %96 = tpu.matmul %95, %1, %cst_20 {dimension_numbers = #tpu.dot_dimension_numbers<[1], [0], [0], [1], [0, 0, 1, 1], [], []>} : vector<16x640xbf16>, vector<640x128xbf16>, vector<16x128xf32> -> vector<16x128xf32>
    %97 = arith.truncf %96 : vector<16x128xf32> to vector<16x128xbf16>
    %c0_21 = arith.constant 0 : index
    %c0_22 = arith.constant 0 : index
    %98 = vector.load %arg3[%c0_21, %c0_22] : memref<16x128xbf16, #tpu.memory_space<vmem>>, vector<16x128xbf16>
    tpu.vector_store %arg3[%c0_21, %c0_22], %97 {strides = array<i32>} : memref<16x128xbf16, #tpu.memory_space<vmem>>, vector<16x128xbf16>,
    return
  }
  func.func @transform_0(%arg0: i32) -> (i32, i32) {
    %c0_i32 = arith.constant 0 : i32
    %c0_i32_0 = arith.constant 0 : i32
    return %arg0, %c0_i32 : i32, i32
  }
  func.func @transform_1(%arg0: i32) -> (i32, i32) {
    %c0_i32 = arith.constant 0 : i32
    %c0_i32_0 = arith.constant 0 : i32
    %c0_i32_1 = arith.constant 0 : i32
    return %c0_i32, %c0_i32_0 : i32, i32
  }
  func.func @transform_2(%arg0: i32) -> (i32, i32) {
    %c0_i32 = arith.constant 0 : i32
    %c0_i32_0 = arith.constant 0 : i32
    return %arg0, %c0_i32 : i32, i32
  }
}

</mosaic_0001>

<llo_original>
// kernel: tpu_custom_call.1
$region0: #{tpu_custom_call.1}
  #allocation0 [shape = 'u32[]', space=smem, size = 0x4, offset = 0x4, fixed_abs, tag = 'smem constant byte address 0x4 - core index']
  #allocation1 [shape = 'u32[144,128]{1,0:T(1,128)}', space=vmem, size = 0x12000, scoped, tag = 'internal scratch']
  %s0 = inlined_call_operand.hbm [shape: f32[16,128], index: 0, kind: input, shape index: {}]
  %s1 = inlined_call_operand.hbm [shape: bf16[640,128], index: 1, kind: input, shape index: {}]
  %s2 = inlined_call_operand.hbm [shape: bf16[16,128], index: 2, kind: output, shape index: {}]
  %s3 = sld [smem:[#allocation0]]
  $region26: #{tpu_custom_call.1} parent=0
    _
  %s5 = ssub.s32 1, %s3
  %s6 = scalar_select 0, %s5, %s3
  $region1: #{tpu_custom_call.1} parent=0
    #allocation2 [shape = 'u8[8192]{0}', space=vmem, size = 0x2000, scoped, tag = 'input window, operand 0, single buffered']
    #allocation3 [shape = 's32[1]{0}', space=sflag, size = 0x4, scoped, tag = 'scoped memory for tpu_custom_call.1']
    #allocation4 [shape = 's32[1]{0}', space=sflag, size = 0x4, scoped, tag = 'scoped memory for tpu_custom_call.1']
    #allocation5 [shape = 'u8[163840]{0}', space=vmem, size = 0x28000, scoped, tag = 'input window, operand 1, single buffered']
    #allocation6 [shape = 's32[1]{0}', space=sflag, size = 0x4, scoped, tag = 'scoped memory for tpu_custom_call.1']
    #allocation7 [shape = 'u8[4096]{0}', space=vmem, size = 0x1000, scoped, tag = 'output window, operand 0, single buffered']
    %7 = vsyncpa [#allocation3], 0
    %8 = vsyncpa [#allocation6], 0
    %9 = vsyncpa [#allocation4], 0
    // Predicated region
    $region2: #{tpu_custom_call.1} parent=1 // pred_check
      _
    $region3: #{tpu_custom_call.1} parent=1 // pred_check_branch
      %11 = sbr.rel (0) target = $region5
    $region4: #{tpu_custom_call.1} parent=1 // pred_region
      %s13 = ssub.s32 256, 256
      %14 = vsyncadd [#allocation3], %s13
      %s15 = sshll.u32 [#allocation2], 4
      %s16 = int_to_ptr.vmem [resolvable:$true] %s15
      %21 = dma.hbm_to_vmem [thread:$0]  %s0, 256, %s16, [#allocation3], 128, 128, 8
    $region5: #{tpu_custom_call.1} parent=1 // pred_fallthru
      _
    // Predicated region
    $region6: #{tpu_custom_call.1} parent=1 // pred_check
      _
    $region7: #{tpu_custom_call.1} parent=1 // pred_check_branch
      %23 = sbr.rel (0) target = $region9
    $region8: #{tpu_custom_call.1} parent=1 // pred_region
      %s25 = ssub.s32 5120, 5120
      %26 = vsyncadd [#allocation6], %s25
      %s27 = sshll.u32 [#allocation5], 4
      %s28 = int_to_ptr.vmem [resolvable:$true] %s27
      %33 = dma.hbm_to_vmem [thread:$0]  %s1, 5120, %s28, [#allocation6], 64, 64, 4
    $region9: #{tpu_custom_call.1} parent=1 // pred_fallthru
      _
    // Predicated region
    $region10: #{tpu_custom_call.1} parent=1 // pred_check
      _
    $region11: #{tpu_custom_call.1} parent=1 // pred_check_branch
      %35 = sbr.rel (0) target = $region13
    $region12: #{tpu_custom_call.1} parent=1 // pred_region
      %36 = dma.done [#allocation3], 256
    $region13: #{tpu_custom_call.1} parent=1 // pred_fallthru
      _
    // Predicated region
    $region14: #{tpu_custom_call.1} parent=1 // pred_check
      _
    $region15: #{tpu_custom_call.1} parent=1 // pred_check_branch
      %38 = sbr.rel (0) target = $region17
    $region16: #{tpu_custom_call.1} parent=1 // pred_region
      %39 = dma.done [#allocation6], 5120
    $region17: #{tpu_custom_call.1} parent=1 // pred_fallthru
      _
    %v41 = vld [vmem:[#allocation2] sm:$0xff]
    %v42 = vld [vmem:[#allocation2 + $0x8] sm:$0xff]
    %v43 = vld [vmem:[#allocation5] sm:$0xf]
    %v44 = vld [vmem:[#allocation5 + $0x4] sm:$0xf]
    %v45 = vld [vmem:[#allocation5 + $0x8] sm:$0xf]
    %v46 = vld [vmem:[#allocation5 + $0xc] sm:$0xf]
    %v47 = vld [vmem:[#allocation5 + $0x10] sm:$0xf]
    %v48 = vld [vmem:[#allocation5 + $0x14] sm:$0xf]
    %v49 = vld [vmem:[#allocation5 + $0x18] sm:$0xf]
    %v50 = vld [vmem:[#allocation5 + $0x1c] sm:$0xf]
    %v51 = vld [vmem:[#allocation5 + $0x20] sm:$0xf]
    %v52 = vld [vmem:[#allocation5 + $0x24] sm:$0xf]
    %v53 = vld [vmem:[#allocation5 + $0x28] sm:$0xf]
    %v54 = vld [vmem:[#allocation5 + $0x2c] sm:$0xf]
    %v55 = vld [vmem:[#allocation5 + $0x30] sm:$0xf]
    %v56 = vld [vmem:[#allocation5 + $0x34] sm:$0xf]
    %v57 = vld [vmem:[#allocation5 + $0x38] sm:$0xf]
    %v58 = vld [vmem:[#allocation5 + $0x3c] sm:$0xf]
    %v59 = vld [vmem:[#allocation5 + $0x40] sm:$0xf]
    %v60 = vld [vmem:[#allocation5 + $0x44] sm:$0xf]
    %v61 = vld [vmem:[#allocation5 + $0x48] sm:$0xf]
    %v62 = vld [vmem:[#allocation5 + $0x4c] sm:$0xf]
    %v63 = vld [vmem:[#allocation5 + $0x50] sm:$0xf]
    %v64 = vld [vmem:[#allocation5 + $0x54] sm:$0xf]
    %v65 = vld [vmem:[#allocation5 + $0x58] sm:$0xf]
    %v66 = vld [vmem:[#allocation5 + $0x5c] sm:$0xf]
    %v67 = vld [vmem:[#allocation5 + $0x60] sm:$0xf]
    %v68 = vld [vmem:[#allocation5 + $0x64] sm:$0xf]
    %v69 = vld [vmem:[#allocation5 + $0x68] sm:$0xf]
    %v70 = vld [vmem:[#allocation5 + $0x6c] sm:$0xf]
    %v71 = vld [vmem:[#allocation5 + $0x70] sm:$0xf]
    %v72 = vld [vmem:[#allocation5 + $0x74] sm:$0xf]
    %v73 = vld [vmem:[#allocation5 + $0x78] sm:$0xf]
    %v74 = vld [vmem:[#allocation5 + $0x7c] sm:$0xf]
    %v75 = vld [vmem:[#allocation5 + $0x80] sm:$0xf]
    %v76 = vld [vmem:[#allocation5 + $0x84] sm:$0xf]
    %v77 = vld [vmem:[#allocation5 + $0x88] sm:$0xf]
    %v78 = vld [vmem:[#allocation5 + $0x8c] sm:$0xf]
    %v79 = vld [vmem:[#allocation5 + $0x90] sm:$0xf]
    %v80 = vld [vmem:[#allocation5 + $0x94] sm:$0xf]
    %v81 = vld [vmem:[#allocation5 + $0x98] sm:$0xf]
    %v82 = vld [vmem:[#allocation5 + $0x9c] sm:$0xf]
    %v83 = vld [vmem:[#allocation5 + $0xa0] sm:$0xf]
    %v84 = vld [vmem:[#allocation5 + $0xa4] sm:$0xf]
    %v85 = vld [vmem:[#allocation5 + $0xa8] sm:$0xf]
    %v86 = vld [vmem:[#allocation5 + $0xac] sm:$0xf]
    %v87 = vld [vmem:[#allocation5 + $0xb0] sm:$0xf]
    %v88 = vld [vmem:[#allocation5 + $0xb4] sm:$0xf]
    %v89 = vld [vmem:[#allocation5 + $0xb8] sm:$0xf]
    %v90 = vld [vmem:[#allocation5 + $0xbc] sm:$0xf]
    %v91 = vld [vmem:[#allocation5 + $0xc0] sm:$0xf]
    %v92 = vld [vmem:[#allocation5 + $0xc4] sm:$0xf]
    %v93 = vld [vmem:[#allocation5 + $0xc8] sm:$0xf]
    %v94 = vld [vmem:[#allocation5 + $0xcc] sm:$0xf]
    %v95 = vld [vmem:[#allocation5 + $0xd0] sm:$0xf]
    %v96 = vld [vmem:[#allocation5 + $0xd4] sm:$0xf]
    %v97 = vld [vmem:[#allocation5 + $0xd8] sm:$0xf]
    %v98 = vld [vmem:[#allocation5 + $0xdc] sm:$0xf]
    %v99 = vld [vmem:[#allocation5 + $0xe0] sm:$0xf]
    %v100 = vld [vmem:[#allocation5 + $0xe4] sm:$0xf]
    %v101 = vld [vmem:[#allocation5 + $0xe8] sm:$0xf]
    %v102 = vld [vmem:[#allocation5 + $0xec] sm:$0xf]
    %v103 = vld [vmem:[#allocation5 + $0xf0] sm:$0xf]
    %v104 = vld [vmem:[#allocation5 + $0xf4] sm:$0xf]
    %v105 = vld [vmem:[#allocation5 + $0xf8] sm:$0xf]
    %v106 = vld [vmem:[#allocation5 + $0xfc] sm:$0xf]
    %v107 = vld [vmem:[#allocation5 + $0x100] sm:$0xf]
    %v108 = vld [vmem:[#allocation5 + $0x104] sm:$0xf]
    %v109 = vld [vmem:[#allocation5 + $0x108] sm:$0xf]
    %v110 = vld [vmem:[#allocation5 + $0x10c] sm:$0xf]
    %v111 = vld [vmem:[#allocation5 + $0x110] sm:$0xf]
    %v112 = vld [vmem:[#allocation5 + $0x114] sm:$0xf]
    %v113 = vld [vmem:[#allocation5 + $0x118] sm:$0xf]
    %v114 = vld [vmem:[#allocation5 + $0x11c] sm:$0xf]
    %v115 = vld [vmem:[#allocation5 + $0x120] sm:$0xf]
    %v116 = vld [vmem:[#allocation5 + $0x124] sm:$0xf]
    %v117 = vld [vmem:[#allocation5 + $0x128] sm:$0xf]
    %v118 = vld [vmem:[#allocation5 + $0x12c] sm:$0xf]
    %v119 = vld [vmem:[#allocation5 + $0x130] sm:$0xf]
    %v120 = vld [vmem:[#allocation5 + $0x134] sm:$0xf]
    %v121 = vld [vmem:[#allocation5 + $0x138] sm:$0xf]
    %v122 = vld [vmem:[#allocation5 + $0x13c] sm:$0xf]
    %v123 = vmul.f32 %v41, 0.5
    %v124 = vmul.f32 %v42, 0.5
    %v125 = vmul.f32 %v41, 0.044715
    %v126 = vmul.f32 %v42, 0.044715
    %v127 = vmul.f32 %v125, %v41
    %v128 = vmul.f32 %v126, %v42
    %v129 = vmul.f32 %v127, %v41
    %v130 = vmul.f32 %v128, %v42
    %v131 = vadd.f32 %v41, %v129
    %v132 = vadd.f32 %v42, %v130
    %v133 = vmul.f32 %v131, 0.7978846
    %v134 = vmul.f32 %v132, 0.7978846
    %v135 = vtanh.pop %v133
    %v136 = vtanh.pop %v134
    %v137 = vadd.f32 %v135, 1.0
    %v138 = vadd.f32 %v136, 1.0
    %v139 = vmul.f32 %v123, %v137
    %v140 = vmul.f32 %v124, %v138
    %vm141 = vcmp.ge.f32.partialorder %v41, -9.0
    %vm142 = vcmp.ge.f32.partialorder %v42, -9.0
    %v143 = vsel %vm141, 1, 0
    %v144 = vsel %vm142, 1, 0
    %v145 = vcvt.s32.f32 %v143
    %v146 = vcvt.s32.f32 %v144
    %vm147 = vcmp.ge.f32.partialorder %v41, -6.0
    %vm148 = vcmp.ge.f32.partialorder %v42, -6.0
    %v149 = vsel %vm147, 1, 0
    %v150 = vsel %vm148, 1, 0
    %v151 = vcvt.s32.f32 %v149
    %v152 = vcvt.s32.f32 %v150
    %vm153 = vcmp.ge.f32.partialorder %v41, -3.0
    %vm154 = vcmp.ge.f32.partialorder %v42, -3.0
    %v155 = vsel %vm153, 1, 0
    %v156 = vsel %vm154, 1, 0
    %v157 = vcvt.s32.f32 %v155
    %v158 = vcvt.s32.f32 %v156
    %vm159 = vcmp.ge.f32.partialorder %v41, 0.0
    %vm160 = vcmp.ge.f32.partialorder %v42, 0.0
    %v161 = vsel %vm159, 1, 0
    %v162 = vsel %vm160, 1, 0
    %v163 = vcvt.s32.f32 %v161
    %v164 = vcvt.s32.f32 %v162
    %vm165 = vcmp.ge.f32.partialorder %v41, 3.0
    %vm166 = vcmp.ge.f32.partialorder %v42, 3.0
    %v167 = vsel %vm165, 1, 0
    %v168 = vsel %vm166, 1, 0
    %v169 = vcvt.s32.f32 %v167
    %v170 = vcvt.s32.f32 %v168
    %vm171 = vcmp.ge.f32.partialorder %v41, 6.0
    %vm172 = vcmp.ge.f32.partialorder %v42, 6.0
    %v173 = vsel %vm171, 1, 0
    %v174 = vsel %vm172, 1, 0
    %v175 = vcvt.s32.f32 %v173
    %v176 = vcvt.s32.f32 %v174
    %vm177 = vcmp.ge.f32.partialorder %v41, 9.0
    %vm178 = vcmp.ge.f32.partialorder %v42, 9.0
    %v179 = vsel %vm177, 1, 0
    %v180 = vsel %vm178, 1, 0
    %v181 = vcvt.s32.f32 %v179
    %v182 = vcvt.s32.f32 %v180
    %v183 = vsub.f32 %v145, %v151
    %v184 = vsub.f32 %v146, %v152
    %v185 = vsub.f32 %v151, %v157
    %v186 = vsub.f32 %v152, %v158
    %v187 = vsub.f32 %v157, %v163
    %v188 = vsub.f32 %v158, %v164
    %v189 = vsub.f32 %v163, %v169
    %v190 = vsub.f32 %v164, %v170
    %v191 = vsub.f32 %v169, %v175
    %v192 = vsub.f32 %v170, %v176
    %v193 = vsub.f32 %v175, %v181
    %v194 = vsub.f32 %v176, %v182
    %v195 = vsub.f32 %v41, -9.0
    %v196 = vsub.f32 %v42, -9.0
    %v197 = vsub.f32 %v41, -6.0
    %v198 = vsub.f32 %v42, -6.0
    %v199 = vsub.f32 %v41, -3.0
    %v200 = vsub.f32 %v42, -3.0
    %v201 = vsub.f32 %v41, 3.0
    %v202 = vsub.f32 %v42, 3.0
    %v203 = vsub.f32 %v41, 6.0
    %v204 = vsub.f32 %v42, 6.0
    %v205 = vsub.f32 %v41, 9.0
    %v206 = vsub.f32 %v42, 9.0
    %v207 = vmul.f32 %v195, %v183
    %v208 = vmul.f32 %v196, %v184
    %v209 = vmul.f32 %v199, %v185
    %v210 = vmul.f32 %v200, %v186
    %v211 = vsub.f32 %v207, %v209
    %v212 = vsub.f32 %v208, %v210
    %v213 = vmul.f32 %v197, %v185
    %v214 = vmul.f32 %v198, %v186
    %v215 = vmul.f32 %v41, %v187
    %v216 = vmul.f32 %v42, %v188
    %v217 = vsub.f32 %v213, %v215
    %v218 = vsub.f32 %v214, %v216
    %v219 = vmul.f32 %v199, %v187
    %v220 = vmul.f32 %v200, %v188
    %v221 = vmul.f32 %v201, %v189
    %v222 = vmul.f32 %v202, %v190
    %v223 = vsub.f32 %v219, %v221
    %v224 = vsub.f32 %v220, %v222
    %v225 = vmul.f32 %v41, %v189
    %v226 = vmul.f32 %v42, %v190
    %v227 = vmul.f32 %v203, %v191
    %v228 = vmul.f32 %v204, %v192
    %v229 = vsub.f32 %v225, %v227
    %v230 = vsub.f32 %v226, %v228
    %v231 = vmul.f32 %v201, %v191
    %v232 = vmul.f32 %v202, %v192
    %v233 = vmul.f32 %v205, %v193
    %v234 = vmul.f32 %v206, %v194
    %v235 = vsub.f32 %v231, %v233
    %v236 = vsub.f32 %v232, %v234
    %v237 = vmul.f32 %v195, %v211
    %v238 = vmul.f32 %v196, %v212
    %v239 = vmul.f32 %v41, %v217
    %v240 = vmul.f32 %v42, %v218
    %v241 = vsub.f32 %v237, %v239
    %v242 = vsub.f32 %v238, %v240
    %v243 = vmul.f32 %v197, %v217
    %v244 = vmul.f32 %v198, %v218
    %v245 = vmul.f32 %v201, %v223
    %v246 = vmul.f32 %v202, %v224
    %v247 = vsub.f32 %v243, %v245
    %v248 = vsub.f32 %v244, %v246
    %v249 = vmul.f32 %v199, %v223
    %v250 = vmul.f32 %v200, %v224
    %v251 = vmul.f32 %v203, %v229
    %v252 = vmul.f32 %v204, %v230
    %v253 = vsub.f32 %v249, %v251
    %v254 = vsub.f32 %v250, %v252
    %v255 = vmul.f32 %v41, %v229
    %v256 = vmul.f32 %v42, %v230
    %v257 = vmul.f32 %v205, %v235
    %v258 = vmul.f32 %v206, %v236
    %v259 = vsub.f32 %v255, %v257
    %v260 = vsub.f32 %v256, %v258
    %v261 = vpack.c.bf16 %v140, %v139
    %v262 = vpack.c.bf16 %v242, %v241
    %v263 = vpack.c.bf16 %v248, %v247
    %v264 = vpack.c.bf16 %v254, %v253
    %v265 = vpack.c.bf16 %v260, %v259
    %v346 = vunpack.c.l.b16 %v43
    %v347 = vunpack.c.l.b16 %v44
    %v348 = vunpack.c.l.b16 %v45
    %v349 = vunpack.c.l.b16 %v46
    %v350 = vunpack.c.l.b16 %v47
    %v351 = vunpack.c.l.b16 %v48
    %v352 = vunpack.c.l.b16 %v49
    %v353 = vunpack.c.l.b16 %v50
    %v354 = vunpack.c.l.b16 %v51
    %v355 = vunpack.c.l.b16 %v52
    %v356 = vunpack.c.l.b16 %v53
    %v357 = vunpack.c.l.b16 %v54
    %v358 = vunpack.c.l.b16 %v55
    %v359 = vunpack.c.l.b16 %v56
    %v360 = vunpack.c.l.b16 %v57
    %v361 = vunpack.c.l.b16 %v58
    %v362 = vunpack.c.l.b16 %v59
    %v363 = vunpack.c.l.b16 %v60
    %v364 = vunpack.c.l.b16 %v61
    %v365 = vunpack.c.l.b16 %v62
    %v366 = vunpack.c.l.b16 %v63
    %v367 = vunpack.c.l.b16 %v64
    %v368 = vunpack.c.l.b16 %v65
    %v369 = vunpack.c.l.b16 %v66
    %v370 = vunpack.c.l.b16 %v67
    %v371 = vunpack.c.l.b16 %v68
    %v372 = vunpack.c.l.b16 %v69
    %v373 = vunpack.c.l.b16 %v70
    %v374 = vunpack.c.l.b16 %v71
    %v375 = vunpack.c.l.b16 %v72
    %v376 = vunpack.c.l.b16 %v73
    %v377 = vunpack.c.l.b16 %v74
    %v378 = vunpack.c.l.b16 %v75
    %v379 = vunpack.c.l.b16 %v76
    %v380 = vunpack.c.l.b16 %v77
    %v381 = vunpack.c.l.b16 %v78
    %v382 = vunpack.c.l.b16 %v79
    %v383 = vunpack.c.l.b16 %v80
    %v384 = vunpack.c.l.b16 %v81
    %v385 = vunpack.c.l.b16 %v82
    %v386 = vunpack.c.l.b16 %v83
    %v387 = vunpack.c.l.b16 %v84
    %v388 = vunpack.c.l.b16 %v85
    %v389 = vunpack.c.l.b16 %v86
    %v390 = vunpack.c.l.b16 %v87
    %v391 = vunpack.c.l.b16 %v88
    %v392 = vunpack.c.l.b16 %v89
    %v393 = vunpack.c.l.b16 %v90
    %v394 = vunpack.c.l.b16 %v91
    %v395 = vunpack.c.l.b16 %v92
    %v396 = vunpack.c.l.b16 %v93
    %v397 = vunpack.c.l.b16 %v94
    %v398 = vunpack.c.l.b16 %v95
    %v399 = vunpack.c.l.b16 %v96
    %v400 = vunpack.c.l.b16 %v97
    %v401 = vunpack.c.l.b16 %v98
    %v402 = vunpack.c.l.b16 %v99
    %v403 = vunpack.c.l.b16 %v100
    %v404 = vunpack.c.l.b16 %v101
    %v405 = vunpack.c.l.b16 %v102
    %v406 = vunpack.c.l.b16 %v103
    %v407 = vunpack.c.l.b16 %v104
    %v408 = vunpack.c.l.b16 %v105
    %v409 = vunpack.c.l.b16 %v106
    %v410 = vunpack.c.l.b16 %v107
    %v411 = vunpack.c.l.b16 %v108
    %v412 = vunpack.c.l.b16 %v109
    %v413 = vunpack.c.l.b16 %v110
    %v414 = vunpack.c.l.b16 %v111
    %v415 = vunpack.c.l.b16 %v112
    %v416 = vunpack.c.l.b16 %v113
    %v417 = vunpack.c.l.b16 %v114
    %v418 = vunpack.c.l.b16 %v115
    %v419 = vunpack.c.l.b16 %v116
    %v420 = vunpack.c.l.b16 %v117
    %v421 = vunpack.c.l.b16 %v118
    %v422 = vunpack.c.l.b16 %v119
    %v423 = vunpack.c.l.b16 %v120
    %v424 = vunpack.c.l.b16 %v121
    %v425 = vunpack.c.l.b16 %v122
    %v426 = vpack.c.b16 %v347, %v346
    %v427 = vpack.c.b16 %v349, %v348
    %v428 = vpack.c.b16 %v351, %v350
    %v429 = vpack.c.b16 %v353, %v352
    %v430 = vpack.c.b16 %v355, %v354
    %v431 = vpack.c.b16 %v357, %v356
    %v432 = vpack.c.b16 %v359, %v358
    %v433 = vpack.c.b16 %v361, %v360
    %v434 = vpack.c.b16 %v363, %v362
    %v435 = vpack.c.b16 %v365, %v364
    %v436 = vpack.c.b16 %v367, %v366
    %v437 = vpack.c.b16 %v369, %v368
    %v438 = vpack.c.b16 %v371, %v370
    %v439 = vpack.c.b16 %v373, %v372
    %v440 = vpack.c.b16 %v375, %v374
    %v441 = vpack.c.b16 %v377, %v376
    %v442 = vpack.c.b16 %v379, %v378
    %v443 = vpack.c.b16 %v381, %v380
    %v444 = vpack.c.b16 %v383, %v382
    %v445 = vpack.c.b16 %v385, %v384
    %v446 = vpack.c.b16 %v387, %v386
    %v447 = vpack.c.b16 %v389, %v388
    %v448 = vpack.c.b16 %v391, %v390
    %v449 = vpack.c.b16 %v393, %v392
    %v450 = vpack.c.b16 %v395, %v394
    %v451 = vpack.c.b16 %v397, %v396
    %v452 = vpack.c.b16 %v399, %v398
    %v453 = vpack.c.b16 %v401, %v400
    %v454 = vpack.c.b16 %v403, %v402
    %v455 = vpack.c.b16 %v405, %v404
    %v456 = vpack.c.b16 %v407, %v406
    %v457 = vpack.c.b16 %v409, %v408
    %v458 = vpack.c.b16 %v411, %v410
    %v459 = vpack.c.b16 %v413, %v412
    %v460 = vpack.c.b16 %v415, %v414
    %v461 = vpack.c.b16 %v417, %v416
    %v462 = vpack.c.b16 %v419, %v418
    %v463 = vpack.c.b16 %v421, %v420
    %v464 = vpack.c.b16 %v423, %v422
    %v465 = vpack.c.b16 %v425, %v424
    %506 = vmatprep.subr.bf16.mxu0 0
    %507 = vmatpush1.bf16.msra.mxu0 %v426
    %508 = vmatprep.subr.bf16.mxu0 0
    %509 = vmatpush1.bf16.msra.mxu0 %v427
    %510 = vmatprep.subr.bf16.mxu0 0
    %511 = vmatpush1.bf16.msra.mxu0 %v428
    %512 = vmatprep.subr.bf16.mxu0 0
    %513 = vmatpush1.bf16.msra.mxu0 %v429
    %514 = vmatprep.subr.bf16.mxu0 0
    %515 = vmatpush1.bf16.msra.mxu0 %v430
    %516 = vmatprep.subr.bf16.mxu0 0
    %517 = vmatpush1.bf16.msra.mxu0 %v431
    %518 = vmatprep.subr.bf16.mxu0 0
    %519 = vmatpush1.bf16.msra.mxu0 %v432
    %520 = vmatprep.subr.bf16.mxu0 0
    %521 = vmatpush1.bf16.msra.mxu0 %v433
    %522 = vmatprep.subr.bf16.mxu0 0
    %523 = vmatpush1.bf16.msra.mxu0 %v434
    %524 = vmatprep.subr.bf16.mxu0 0
    %525 = vmatpush1.bf16.msra.mxu0 %v435
    %526 = vmatprep.subr.bf16.mxu0 0
    %527 = vmatpush1.bf16.msra.mxu0 %v436
    %528 = vmatprep.subr.bf16.mxu0 0
    %529 = vmatpush1.bf16.msra.mxu0 %v437
    %530 = vmatprep.subr.bf16.mxu0 0
    %531 = vmatpush1.bf16.msra.mxu0 %v438
    %532 = vmatprep.subr.bf16.mxu0 0
    %533 = vmatpush1.bf16.msra.mxu0 %v439
    %534 = vmatprep.subr.bf16.mxu0 0
    %535 = vmatpush1.bf16.msra.mxu0 %v440
    %536 = vmatprep.subr.bf16.mxu0 0
    %537 = vmatpush1.bf16.msra.mxu0 %v441
    %538 = vmatprep.mubr.bf16.mxu0 %v262
    %539 = vmatmul.mubr.bf16.gmra.mrb[0].mxu0 %v261
    %v540 = vpop.f32.mrb[0].mxu0
    %v541 = vadd.f32 0.0, %v540
    %v542 = vpop.f32.mrb[0].mxu0
    %v543 = vpop.f32.mrb[0].mxu0
    %v544 = vadd.f32 0.0, %v543
    %v545 = vpop.f32.mrb[0].mxu0
    %546 = vdwg.mxu0
    %547 = vmatprep.subr.bf16.mxu0 0
    %548 = vmatpush1.bf16.msra.mxu0 %v442
    %549 = vmatprep.subr.bf16.mxu0 0
    %550 = vmatpush1.bf16.msra.mxu0 %v443
    %551 = vmatprep.subr.bf16.mxu0 0
    %552 = vmatpush1.bf16.msra.mxu0 %v444
    %553 = vmatprep.subr.bf16.mxu0 0
    %554 = vmatpush1.bf16.msra.mxu0 %v445
    %555 = vmatprep.subr.bf16.mxu0 0
    %556 = vmatpush1.bf16.msra.mxu0 %v446
    %557 = vmatprep.subr.bf16.mxu0 0
    %558 = vmatpush1.bf16.msra.mxu0 %v447
    %559 = vmatprep.subr.bf16.mxu0 0
    %560 = vmatpush1.bf16.msra.mxu0 %v448
    %561 = vmatprep.subr.bf16.mxu0 0
    %562 = vmatpush1.bf16.msra.mxu0 %v449
    %563 = vmatprep.subr.bf16.mxu0 0
    %564 = vmatpush1.bf16.msra.mxu0 %v450
    %565 = vmatprep.subr.bf16.mxu0 0
    %566 = vmatpush1.bf16.msra.mxu0 %v451
    %567 = vmatprep.subr.bf16.mxu0 0
    %568 = vmatpush1.bf16.msra.mxu0 %v452
    %569 = vmatprep.subr.bf16.mxu0 0
    %570 = vmatpush1.bf16.msra.mxu0 %v453
    %571 = vmatprep.subr.bf16.mxu0 0
    %572 = vmatpush1.bf16.msra.mxu0 %v454
    %573 = vmatprep.subr.bf16.mxu0 0
    %574 = vmatpush1.bf16.msra.mxu0 %v455
    %575 = vmatprep.subr.bf16.mxu0 0
    %576 = vmatpush1.bf16.msra.mxu0 %v456
    %577 = vmatprep.subr.bf16.mxu0 0
    %578 = vmatpush1.bf16.msra.mxu0 %v457
    %579 = vmatprep.mubr.bf16.mxu0 %v264
    %580 = vmatmul.mubr.bf16.gmra.mrb[0].mxu0 %v263
    %v581 = vpop.f32.mrb[0].mxu0
    %v582 = vadd.f32 %v541, %v581
    %v583 = vpop.f32.mrb[0].mxu0
    %v584 = vpop.f32.mrb[0].mxu0
    %v585 = vadd.f32 %v544, %v584
    %v586 = vpop.f32.mrb[0].mxu0
    %587 = vdwg.mxu0
    %588 = vmatprep.subr.bf16.mxu0 0
    %589 = vmatpush1.bf16.msra.mxu0 %v458
    %590 = vmatprep.subr.bf16.mxu0 0
    %591 = vmatpush1.bf16.msra.mxu0 %v459
    %592 = vmatprep.subr.bf16.mxu0 0
    %593 = vmatpush1.bf16.msra.mxu0 %v460
    %594 = vmatprep.subr.bf16.mxu0 0
    %595 = vmatpush1.bf16.msra.mxu0 %v461
    %596 = vmatprep.subr.bf16.mxu0 0
    %597 = vmatpush1.bf16.msra.mxu0 %v462
    %598 = vmatprep.subr.bf16.mxu0 0
    %599 = vmatpush1.bf16.msra.mxu0 %v463
    %600 = vmatprep.subr.bf16.mxu0 0
    %601 = vmatpush1.bf16.msra.mxu0 %v464
    %602 = vmatprep.subr.bf16.mxu0 0
    %603 = vmatpush1.bf16.msra.mxu0 %v465
    %604 = vmatprep.subr.bf16.mxu0 0
    %605 = vmatpush1.bf16.msra.mxu0 0
    %606 = vmatprep.subr.bf16.mxu0 0
    %607 = vmatpush1.bf16.msra.mxu0 0
    %608 = vmatprep.subr.bf16.mxu0 0
    %609 = vmatpush1.bf16.msra.mxu0 0
    %610 = vmatprep.subr.bf16.mxu0 0
    %611 = vmatpush1.bf16.msra.mxu0 0
    %612 = vmatprep.subr.bf16.mxu0 0
    %613 = vmatpush1.bf16.msra.mxu0 0
    %614 = vmatprep.subr.bf16.mxu0 0
    %615 = vmatpush1.bf16.msra.mxu0 0
    %616 = vmatprep.subr.bf16.mxu0 0
    %617 = vmatpush1.bf16.msra.mxu0 0
    %618 = vmatprep.subr.bf16.mxu0 0
    %619 = vmatpush1.bf16.msra.mxu0 0
    %620 = vmatprep.mubr.bf16.mxu0 0
    %621 = vmatmul.mubr.bf16.gmra.mrb[0].mxu0 %v265
    %v622 = vpop.f32.mrb[0].mxu0
    %v623 = vadd.f32 %v582, %v622
    %v624 = vpop.f32.mrb[0].mxu0
    %v625 = vpop.f32.mrb[0].mxu0
    %v626 = vadd.f32 %v585, %v625
    %v627 = vpop.f32.mrb[0].mxu0
    %628 = vdwg.mxu0
    %v629 = vpack.c.bf16 %v626, %v623
    %v631 = vunpack.c.l.b16 %v629
    %v632 = vunpack.c.h.b16 %v629
    %v633 = vpack.c.b16 %v631, %v631
    %v634 = vpack.c.b16 %v632, %v632
    %637 = vst [vmem:[#allocation7] sm:$0xf] %v633
    %638 = vst [vmem:[#allocation7 + $0x4] sm:$0xf] %v634
    // Predicated region
    $region18: #{tpu_custom_call.1} parent=1 // pred_check
      _
    $region19: #{tpu_custom_call.1} parent=1 // pred_check_branch
      %640 = sbr.rel (0) target = $region21
    $region20: #{tpu_custom_call.1} parent=1 // pred_region
      %s642 = ssub.s32 128, 128
      %643 = vsyncadd [#allocation4], %s642
      %s644 = sshll.u32 [#allocation7], 4
      %s645 = int_to_ptr.vmem [resolvable:$true] %s644
      %650 = dma.vmem_to_hbm [thread:$0]  %s645, 128, %s2, [#allocation4], 64, 64, 4
    $region21: #{tpu_custom_call.1} parent=1 // pred_fallthru
      _
    // Predicated region
    $region22: #{tpu_custom_call.1} parent=1 // pred_check
      _
    $region23: #{tpu_custom_call.1} parent=1 // pred_check_branch
      %652 = sbr.rel (0) target = $region25
    $region24: #{tpu_custom_call.1} parent=1 // pred_region
      %653 = dma.done [#allocation4], 128
    $region25: #{tpu_custom_call.1} parent=1 // pred_fallthru
      _
    %654 = vsyncpa [#allocation3], 1
    %655 = vsyncpa [#allocation6], 1
    %656 = vsyncpa [#allocation4], 1

</llo_original>
